<compile_context>
chip_gen: v6e
topology: v6e:2x2x1
jax: 0.10.0
libtpu: 0.0.40
codegen_flags: <defaults>
</compile_context>

<pallas_src>
import functools

import jax
import jax.numpy as jnp
from jax import lax
from jax.experimental import pallas as pl
from jax.experimental.pallas import tpu as pltpu


# ----------------------------------------------------------------------------
# Fused kernel: whole forward in one invocation (no grid).
# ----------------------------------------------------------------------------
def _qsh_kernel(x_ref, mask_ref, eps_ref,
                w0_ref, b0_ref, w1_ref, b1_ref, w2_ref, b2_ref,
                w3_ref, b3_ref, w4_ref, b4_ref,
                mv_ref, gsqrt_ref, score_ref,
                *, B, T, S):
    f32 = jnp.float32
    D2 = w0_ref.shape[1]
    D = 2 * D2
    BT = B * T
    BS = B * S

    x = x_ref[...]                                                   # [BT, D]

    # common_base: Linear(D, D2) + ReLU
    h = jnp.maximum(
        jnp.dot(x, w0_ref[...], preferred_element_type=f32) + b0_ref[...], 0.0)

    # mean_var_linear: Linear(D2, D2) + ReLU, then merged Linear(D2, D)
    m = jnp.maximum(
        jnp.dot(h, w1_ref[...], preferred_element_type=f32) + b1_ref[...], 0.0)
    mv = jnp.dot(m, w2_ref[...], preferred_element_type=f32) + b2_ref[...]  # [BT, D]

    # exp() only on the log-var half (upper D2 lanes); one packed, lane-dense
    # [BT, D] store instead of two masked 16-lane stores.
    lane = lax.broadcasted_iota(jnp.int32, (BT, D), 1)
    mv_packed = jnp.where(lane < D2, mv, jnp.exp(mv))                # [mean|var]
    mv_ref[...] = mv_packed

    mean = mv_packed[:, :D2]                                         # [BT, D2]
    var = mv_packed[:, D2:]                                          # [BT, D2]

    # ---- PhaseDistComposer.process_phases stand-in ----
    # TODO(synk): exact composer semantics unavailable; masked precision-
    #             weighted Gaussian product over T + reparameterized sampling.
    # Per-batch sum over T done as a [B, BT] segment-indicator matmul so all
    # ops stay 2-D.
    b_idx = lax.broadcasted_iota(jnp.int32, (B, BT), 0)
    t_idx = lax.broadcasted_iota(jnp.int32, (B, BT), 1)
    seg = jnp.logical_and(t_idx >= b_idx * T,
                          t_idx < (b_idx + 1) * T).astype(f32)       # [B, BT]

    prec = mask_ref[...] / (var + 1e-6)                              # [BT, D2]
    g_prec = jnp.dot(seg, prec, preferred_element_type=f32) + 1e-6   # [B, D2]
    g_sqrt = lax.rsqrt(g_prec)                                       # EUP slot
    g_var = g_sqrt * g_sqrt
    g_mean = g_var * jnp.dot(seg, prec * mean,
                             preferred_element_type=f32)             # [B, D2]
    gsqrt_ref[...] = g_sqrt

    # Expand per-batch stats to per-sample rows (one-hot matmul), then
    # reparameterized sampling + scoring_head: Linear + ReLU + Linear.
    r_idx = lax.broadcasted_iota(jnp.int32, (BS, B), 0)
    c_idx = lax.broadcasted_iota(jnp.int32, (BS, B), 1)
    expand = jnp.logical_and(r_idx >= c_idx * S,
                             r_idx < (c_idx + 1) * S).astype(f32)    # [BS, B]

    samples = (jnp.dot(expand, g_mean, preferred_element_type=f32)
               + jnp.dot(expand, g_sqrt, preferred_element_type=f32)
               * eps_ref[...])                                       # [BS, D2]
    hs = jnp.maximum(
        jnp.dot(samples, w3_ref[...], preferred_element_type=f32) + b3_ref[...],
        0.0)                                                         # [BS, D2]
    score_ref[...] = (jnp.dot(hs, w4_ref[...], preferred_element_type=f32)
                      + b4_ref[...])                                 # [BS, bins]


def _fused_forward(x2d, mask2d, eps2d, params, B, T, S):
    BT, D = x2d.shape
    D2 = D // 2
    BS = B * S
    bins = params["w4"].shape[-1]

    vmem = lambda: pl.BlockSpec(memory_space=pltpu.MemorySpace.VMEM)

    return pl.pallas_call(
        functools.partial(_qsh_kernel, B=B, T=T, S=S),
        out_shape=(
            jax.ShapeDtypeStruct((BT, D), jnp.float32),   # packed [mean | var]
            jax.ShapeDtypeStruct((B, D2), jnp.float32),   # global sqrt var
            jax.ShapeDtypeStruct((BS, bins), jnp.float32),# per-sample scores
        ),
        in_specs=[vmem() for _ in range(13)],
        out_specs=(vmem(), vmem(), vmem()),
    )(x2d, mask2d, eps2d,
      params["w0"], params["b0"], params["w1"], params["b1"],
      params["w2"], params["b2"], params["w3"], params["b3"],
      params["w4"], params["b4"])


# ----------------------------------------------------------------------------
# Parameters (xavier_uniform for dim>1 params, zeros for biases; temperature
# kept for completeness but unused in forward()).
# ----------------------------------------------------------------------------
def _xavier(key, fan_in, fan_out):
    limit = jnp.sqrt(6.0 / (fan_in + fan_out))
    return jax.random.uniform(key, (fan_in, fan_out), jnp.float32, -limit, limit)


def make_params(key, input_dim, score_bins):
    d, d2 = input_dim, input_dim // 2
    ks = jax.random.split(key, 5)
    return {
        # common_base: Linear(d, d2)
        "w0": _xavier(ks[0], d, d2), "b0": jnp.zeros((1, d2), jnp.float32),
        # mean_var_linear: Linear(d2, d2), ReLU, Linear(d2, d) (merged mean|logvar)
        "w1": _xavier(ks[1], d2, d2), "b1": jnp.zeros((1, d2), jnp.float32),
        "w2": _xavier(ks[2], d2, d), "b2": jnp.zeros((1, d), jnp.float32),
        # scoring_head: Linear(d2, d2), ReLU, Linear(d2, score_bins)
        "w3": _xavier(ks[3], d2, d2), "b3": jnp.zeros((1, d2), jnp.float32),
        "w4": _xavier(ks[4], d2, score_bins),
        "b4": jnp.zeros((1, score_bins), jnp.float32),
        # nn.Parameter(torch.ones(1) * 2); not used in forward()
        "temperature": jnp.full((1,), 2.0, jnp.float32),
    }


# ----------------------------------------------------------------------------
# Full forward (use_stochastic_embd=True path).
# x: [B, T, input_dim]; gt_actions: [B, T] (validity mask source).
# Returns (phase_mean_emb, phase_var_emb, global_sqrt_var, all_sample_output)
#   shapes: [B,T,D/2], [B,T,D/2], [B,D/2], [num_samples, B, score_bins]
#   (last one matches the torch reference's .permute(1, 0, 2)).
# ----------------------------------------------------------------------------
@functools.partial(jax.jit, static_argnames=("num_random_samples",))
def quality_score_head_forward(x, gt_actions, params, sample_key,
                               num_random_samples=1):
    B, T, D = x.shape
    D2 = D // 2
    S = num_random_samples
    bins = params["w4"].shape[-1]

    # lane-dense validity mask (broadcast in the wrapper, not in the kernel)
    mask = (gt_actions > 0).astype(jnp.float32).reshape(B * T, 1)
    mask_bt = jnp.broadcast_to(mask, (B * T, D2))
    eps = jax.random.normal(sample_key, (B * S, D2), jnp.float32)

    mv, gsqrt, scores = _fused_forward(
        x.reshape(B * T, D).astype(jnp.float32), mask_bt, eps, params, B, T, S)

    mv = mv.reshape(B, T, D)
    phase_mean_emb = mv[:, :, :D2]
    phase_var_emb = mv[:, :, D2:]
    global_sqrt_var = gsqrt                                  # [B, D2]
    # torch reference applies .permute(1, 0, 2) -> [num_samples, B, bins]
    all_sample_output = scores.reshape(B, S, bins).transpose(1, 0, 2)
    return phase_mean_emb, phase_var_emb, global_sqrt_var, all_sample_output


# ----------------------------------------------------------------------------
# Plain-JAX reference of the same forward (for a correctness check).
# ----------------------------------------------------------------------------
def _reference_forward(x, gt_actions, params, sample_key, num_random_samples):
    B, T, D = x.shape
    D2 = D // 2
    S = num_random_samples
    x = x.astype(jnp.float32)
    h = jax.nn.relu(x @ params["w0"] + params["b0"])
    m = jax.nn.relu(h @ params["w1"] + params["b1"])
    mv = m @ params["w2"] + params["b2"]
    mean = mv[..., :D2]
    var = jnp.exp(mv[..., D2:])
    mask = (gt_actions > 0).astype(jnp.float32)[..., None]           # [B, T, 1]
    prec = mask / (var + 1e-6)
    g_prec = prec.sum(axis=1) + 1e-6                                 # [B, D2]
    g_var = 1.0 / g_prec
    g_mean = g_var * (prec * mean).sum(axis=1)
    g_sqrt = jnp.sqrt(g_var)
    eps = jax.random.normal(sample_key, (B * S, D2), jnp.float32).reshape(B, S, D2)
    samples = g_mean[:, None, :] + g_sqrt[:, None, :] * eps
    hs = jax.nn.relu(samples @ params["w3"] + params["b3"])
    scores = hs @ params["w4"] + params["b4"]                        # [B, S, bins]
    return mean, var, g_sqrt, scores.transpose(1, 0, 2)


if __name__ == "__main__":
    B, T, INPUT_DIM, SCORE_BINS, NUM_SAMPLES = 2, 8, 32, 4, 2

    root = jax.random.PRNGKey(0)
    k_param, k_x, k_act, k_sample = jax.random.split(root, 4)

    params = make_params(k_param, INPUT_DIM, SCORE_BINS)
    x = jax.random.normal(k_x, (B, T, INPUT_DIM), jnp.float32)
    gt_actions = jax.random.randint(k_act, (B, T), 0, 3).astype(jnp.int32)

    outs = quality_score_head_forward(
        x, gt_actions, params, k_sample, num_random_samples=NUM_SAMPLES)
    jax.block_until_ready(outs)

    phase_mean_emb, phase_var_emb, global_sqrt_var, all_sample_output = outs
    assert phase_mean_emb.shape == (B, T, INPUT_DIM // 2)
    assert phase_var_emb.shape == (B, T, INPUT_DIM // 2)
    assert global_sqrt_var.shape == (B, INPUT_DIM // 2)
    assert all_sample_output.shape == (NUM_SAMPLES, B, SCORE_BINS)
    assert bool(jnp.all(phase_var_emb > 0))          # exp() output is positive
    assert bool(jnp.all(jnp.isfinite(all_sample_output)))

    # Cross-check against the plain-JAX reference (loose tol: MXU f32 passes).
    ref = _reference_forward(x, gt_actions, params, k_sample, NUM_SAMPLES)
    for got, want in zip(outs, ref):
        assert bool(jnp.allclose(got, want, rtol=2e-2, atol=2e-2)), (
            "mismatch vs reference")

    print("KERNEL_OK")
</pallas_src>

<mosaic_0001>
module attributes {stable_mosaic.version = 11 : i64} {
  func.func @_qsh_kernel(%arg0: memref<16x32xf32, #tpu.memory_space<vmem>>, %arg1: memref<16x16xf32, #tpu.memory_space<vmem>>, %arg2: memref<4x16xf32, #tpu.memory_space<vmem>>, %arg3: memref<32x16xf32, #tpu.memory_space<vmem>>, %arg4: memref<1x16xf32, #tpu.memory_space<vmem>>, %arg5: memref<16x16xf32, #tpu.memory_space<vmem>>, %arg6: memref<1x16xf32, #tpu.memory_space<vmem>>, %arg7: memref<16x32xf32, #tpu.memory_space<vmem>>, %arg8: memref<1x32xf32, #tpu.memory_space<vmem>>, %arg9: memref<16x16xf32, #tpu.memory_space<vmem>>, %arg10: memref<1x16xf32, #tpu.memory_space<vmem>>, %arg11: memref<16x4xf32, #tpu.memory_space<vmem>>, %arg12: memref<1x4xf32, #tpu.memory_space<vmem>>, %arg13: memref<16x32xf32, #tpu.memory_space<vmem>>, %arg14: memref<2x16xf32, #tpu.memory_space<vmem>>, %arg15: memref<4x4xf32, #tpu.memory_space<vmem>>) attributes {dimension_semantics = [], scalar_prefetch = 0 : i64, scratch_operands = 0 : i64, tpu.core_type = #tpu.core_type<tc>} {
    %c0 = arith.constant 0 : index
    %c0_0 = arith.constant 0 : index
    %0 = vector.load %arg0[%c0, %c0_0] : memref<16x32xf32, #tpu.memory_space<vmem>>, vector<16x32xf32>
    %c0_1 = arith.constant 0 : index
    %c0_2 = arith.constant 0 : index
    %1 = vector.load %arg3[%c0_1, %c0_2] : memref<32x16xf32, #tpu.memory_space<vmem>>, vector<32x16xf32>
    %cst = arith.constant dense<0.000000e+00> : vector<16x16xf32>
    %2 = tpu.matmul %0, %1, %cst {dimension_numbers = #tpu.dot_dimension_numbers<[1], [0], [0], [1], [0, 0, 1, 1], [], []>} : vector<16x32xf32>, vector<32x16xf32>, vector<16x16xf32> -> vector<16x16xf32>
    %c0_3 = arith.constant 0 : index
    %c0_4 = arith.constant 0 : index
    %3 = vector.load %arg4[%c0_3, %c0_4] : memref<1x16xf32, #tpu.memory_space<vmem>>, vector<1x16xf32>
    %4 = vector.broadcast %3 : vector<1x16xf32> to vector<16x16xf32>
    %5 = arith.addf %2, %4 : vector<16x16xf32>
    %cst_5 = arith.constant 0.000000e+00 : f32
    %6 = vector.broadcast %cst_5 : f32 to vector<16x16xf32>
    %7 = arith.maximumf %5, %6 : vector<16x16xf32>
    %c0_6 = arith.constant 0 : index
    %c0_7 = arith.constant 0 : index
    %8 = vector.load %arg5[%c0_6, %c0_7] : memref<16x16xf32, #tpu.memory_space<vmem>>, vector<16x16xf32>
    %cst_8 = arith.constant dense<0.000000e+00> : vector<16x16xf32>
    %9 = tpu.matmul %7, %8, %cst_8 {dimension_numbers = #tpu.dot_dimension_numbers<[1], [0], [0], [1], [0, 0, 1, 1], [], []>} : vector<16x16xf32>, vector<16x16xf32>, vector<16x16xf32> -> vector<16x16xf32>
    %c0_9 = arith.constant 0 : index
    %c0_10 = arith.constant 0 : index
    %10 = vector.load %arg6[%c0_9, %c0_10] : memref<1x16xf32, #tpu.memory_space<vmem>>, vector<1x16xf32>
    %11 = vector.broadcast %10 : vector<1x16xf32> to vector<16x16xf32>
    %12 = arith.addf %9, %11 : vector<16x16xf32>
    %cst_11 = arith.constant 0.000000e+00 : f32
    %13 = vector.broadcast %cst_11 : f32 to vector<16x16xf32>
    %14 = arith.maximumf %12, %13 : vector<16x16xf32>
    %c0_12 = arith.constant 0 : index
    %c0_13 = arith.constant 0 : index
    %15 = vector.load %arg7[%c0_12, %c0_13] : memref<16x32xf32, #tpu.memory_space<vmem>>, vector<16x32xf32>
    %cst_14 = arith.constant dense<0.000000e+00> : vector<16x32xf32>
    %16 = tpu.matmul %14, %15, %cst_14 {dimension_numbers = #tpu.dot_dimension_numbers<[1], [0], [0], [1], [0, 0, 1, 1], [], []>} : vector<16x16xf32>, vector<16x32xf32>, vector<16x32xf32> -> vector<16x32xf32>
    %c0_15 = arith.constant 0 : index
    %c0_16 = arith.constant 0 : index
    %17 = vector.load %arg8[%c0_15, %c0_16] : memref<1x32xf32, #tpu.memory_space<vmem>>, vector<1x32xf32>
    %18 = vector.broadcast %17 : vector<1x32xf32> to vector<16x32xf32>
    %19 = arith.addf %16, %18 : vector<16x32xf32>
    %20 = tpu.iota {dimensions = array<i32: 1>} : vector<16x32xi32>
    %c16_i32 = arith.constant 16 : i32
    %21 = vector.broadcast %c16_i32 : i32 to vector<16x32xi32>
    %22 = arith.cmpi slt, %20, %21 : vector<16x32xi32>
    %23 = math.exp %19 : vector<16x32xf32>
    %24 = arith.select %22, %19, %23 : vector<16x32xi1>, vector<16x32xf32>
    %c0_17 = arith.constant 0 : index
    %c0_18 = arith.constant 0 : index
    %25 = vector.load %arg13[%c0_17, %c0_18] : memref<16x32xf32, #tpu.memory_space<vmem>>, vector<16x32xf32>
    tpu.vector_store %arg13[%c0_17, %c0_18], %24 {strides = array<i32>} : memref<16x32xf32, #tpu.memory_space<vmem>>, vector<16x32xf32>,
    %26 = vector.extract_strided_slice %24 {offsets = [0, 0], sizes = [16, 16], strides = [1, 1]} : vector<16x32xf32> to vector<16x16xf32>
    %27 = vector.extract_strided_slice %24 {offsets = [0, 16], sizes = [16, 16], strides = [1, 1]} : vector<16x32xf32> to vector<16x16xf32>
    %28 = tpu.iota {dimensions = array<i32: 0>} : vector<2x16xi32>
    %29 = tpu.iota {dimensions = array<i32: 1>} : vector<2x16xi32>
    %c8_i32 = arith.constant 8 : i32
    %30 = vector.broadcast %c8_i32 : i32 to vector<2x16xi32>
    %31 = arith.muli %28, %30 : vector<2x16xi32>
    %32 = arith.cmpi sge, %29, %31 : vector<2x16xi32>
    %c1_i32 = arith.constant 1 : i32
    %33 = vector.broadcast %c1_i32 : i32 to vector<2x16xi32>
    %34 = arith.addi %28, %33 : vector<2x16xi32>
    %c8_i32_19 = arith.constant 8 : i32
    %35 = vector.broadcast %c8_i32_19 : i32 to vector<2x16xi32>
    %36 = arith.muli %34, %35 : vector<2x16xi32>
    %37 = arith.cmpi slt, %29, %36 : vector<2x16xi32>
    %38 = arith.andi %32, %37 : vector<2x16xi1>
    %39 = arith.extui %38 : vector<2x16xi1> to vector<2x16xi32>
    %40 = arith.sitofp %39 : vector<2x16xi32> to vector<2x16xf32>
    %c0_20 = arith.constant 0 : index
    %c0_21 = arith.constant 0 : index
    %41 = vector.load %arg1[%c0_20, %c0_21] : memref<16x16xf32, #tpu.memory_space<vmem>>, vector<16x16xf32>
    %cst_22 = arith.constant 9.99999997E-7 : f32
    %42 = vector.broadcast %cst_22 : f32 to vector<16x16xf32>
    %43 = arith.addf %27, %42 : vector<16x16xf32>
    %44 = arith.divf %41, %43 : vector<16x16xf32>
    %cst_23 = arith.constant dense<0.000000e+00> : vector<2x16xf32>
    %45 = tpu.matmul %40, %44, %cst_23 {dimension_numbers = #tpu.dot_dimension_numbers<[1], [0], [0], [1], [0, 0, 1, 1], [], []>} : vector<2x16xf32>, vector<16x16xf32>, vector<2x16xf32> -> vector<2x16xf32>
    %cst_24 = arith.constant 9.99999997E-7 : f32
    %46 = vector.broadcast %cst_24 : f32 to vector<2x16xf32>
    %47 = arith.addf %45, %46 : vector<2x16xf32>
    %48 = math.rsqrt %47 : vector<2x16xf32>
    %49 = arith.mulf %48, %48 : vector<2x16xf32>
    %50 = arith.mulf %44, %26 : vector<16x16xf32>
    %cst_25 = arith.constant dense<0.000000e+00> : vector<2x16xf32>
    %51 = tpu.matmul %40, %50, %cst_25 {dimension_numbers = #tpu.dot_dimension_numbers<[1], [0], [0], [1], [0, 0, 1, 1], [], []>} : vector<2x16xf32>, vector<16x16xf32>, vector<2x16xf32> -> vector<2x16xf32>
    %52 = arith.mulf %49, %51 : vector<2x16xf32>
    %c0_26 = arith.constant 0 : index
    %c0_27 = arith.constant 0 : index
    %53 = vector.load %arg14[%c0_26, %c0_27] : memref<2x16xf32, #tpu.memory_space<vmem>>, vector<2x16xf32>
    tpu.vector_store %arg14[%c0_26, %c0_27], %48 {strides = array<i32>} : memref<2x16xf32, #tpu.memory_space<vmem>>, vector<2x16xf32>,
    %54 = tpu.iota {dimensions = array<i32: 0>} : vector<4x2xi32>
    %55 = tpu.iota {dimensions = array<i32: 1>} : vector<4x2xi32>
    %c2_i32 = arith.constant 2 : i32
    %56 = vector.broadcast %c2_i32 : i32 to vector<4x2xi32>
    %57 = arith.muli %55, %56 : vector<4x2xi32>
    %58 = arith.cmpi sge, %54, %57 : vector<4x2xi32>
    %c1_i32_28 = arith.constant 1 : i32
    %59 = vector.broadcast %c1_i32_28 : i32 to vector<4x2xi32>
    %60 = arith.addi %55, %59 : vector<4x2xi32>
    %c2_i32_29 = arith.constant 2 : i32
    %61 = vector.broadcast %c2_i32_29 : i32 to vector<4x2xi32>
    %62 = arith.muli %60, %61 : vector<4x2xi32>
    %63 = arith.cmpi slt, %54, %62 : vector<4x2xi32>
    %64 = arith.andi %58, %63 : vector<4x2xi1>
    %65 = arith.extui %64 : vector<4x2xi1> to vector<4x2xi32>
    %66 = arith.sitofp %65 : vector<4x2xi32> to vector<4x2xf32>
    %cst_30 = arith.constant dense<0.000000e+00> : vector<4x16xf32>
    %67 = tpu.matmul %66, %52, %cst_30 {dimension_numbers = #tpu.dot_dimension_numbers<[1], [0], [0], [1], [0, 0, 1, 1], [], []>} : vector<4x2xf32>, vector<2x16xf32>, vector<4x16xf32> -> vector<4x16xf32>
    %cst_31 = arith.constant dense<0.000000e+00> : vector<4x16xf32>
    %68 = tpu.matmul %66, %48, %cst_31 {dimension_numbers = #tpu.dot_dimension_numbers<[1], [0], [0], [1], [0, 0, 1, 1], [], []>} : vector<4x2xf32>, vector<2x16xf32>, vector<4x16xf32> -> vector<4x16xf32>
    %c0_32 = arith.constant 0 : index
    %c0_33 = arith.constant 0 : index
    %69 = vector.load %arg2[%c0_32, %c0_33] : memref<4x16xf32, #tpu.memory_space<vmem>>, vector<4x16xf32>
    %70 = arith.mulf %68, %69 : vector<4x16xf32>
    %71 = arith.addf %67, %70 : vector<4x16xf32>
    %c0_34 = arith.constant 0 : index
    %c0_35 = arith.constant 0 : index
    %72 = vector.load %arg9[%c0_34, %c0_35] : memref<16x16xf32, #tpu.memory_space<vmem>>, vector<16x16xf32>
    %cst_36 = arith.constant dense<0.000000e+00> : vector<4x16xf32>
    %73 = tpu.matmul %71, %72, %cst_36 {dimension_numbers = #tpu.dot_dimension_numbers<[1], [0], [0], [1], [0, 0, 1, 1], [], []>} : vector<4x16xf32>, vector<16x16xf32>, vector<4x16xf32> -> vector<4x16xf32>
    %c0_37 = arith.constant 0 : index
    %c0_38 = arith.constant 0 : index
    %74 = vector.load %arg10[%c0_37, %c0_38] : memref<1x16xf32, #tpu.memory_space<vmem>>, vector<1x16xf32>
    %75 = vector.broadcast %74 : vector<1x16xf32> to vector<4x16xf32>
    %76 = arith.addf %73, %75 : vector<4x16xf32>
    %cst_39 = arith.constant 0.000000e+00 : f32
    %77 = vector.broadcast %cst_39 : f32 to vector<4x16xf32>
    %78 = arith.maximumf %76, %77 : vector<4x16xf32>
    %c0_40 = arith.constant 0 : index
    %c0_41 = arith.constant 0 : index
    %79 = vector.load %arg11[%c0_40, %c0_41] : memref<16x4xf32, #tpu.memory_space<vmem>>, vector<16x4xf32>
    %cst_42 = arith.constant dense<0.000000e+00> : vector<4x4xf32>
    %80 = tpu.matmul %78, %79, %cst_42 {dimension_numbers = #tpu.dot_dimension_numbers<[1], [0], [0], [1], [0, 0, 1, 1], [], []>} : vector<4x16xf32>, vector<16x4xf32>, vector<4x4xf32> -> vector<4x4xf32>
    %c0_43 = arith.constant 0 : index
    %c0_44 = arith.constant 0 : index
    %81 = vector.load %arg12[%c0_43, %c0_44] : memref<1x4xf32, #tpu.memory_space<vmem>>, vector<1x4xf32>
    %82 = vector.broadcast %81 : vector<1x4xf32> to vector<4x4xf32>
    %83 = arith.addf %80, %82 : vector<4x4xf32>
    %c0_45 = arith.constant 0 : index
    %c0_46 = arith.constant 0 : index
    %84 = vector.load %arg15[%c0_45, %c0_46] : memref<4x4xf32, #tpu.memory_space<vmem>>, vector<4x4xf32>
    tpu.vector_store %arg15[%c0_45, %c0_46], %83 {strides = array<i32>} : memref<4x4xf32, #tpu.memory_space<vmem>>, vector<4x4xf32>,
    return
  }
}

</mosaic_0001>

<llo_original>
// kernel: quality_score_head_forward.1
$region0: #{quality_score_head_forward.1}
  #allocation0 [shape = 'u32[]', space=smem, size = 0x4, offset = 0x4, fixed_abs, tag = 'smem constant byte address 0x4 - core index']
  #allocation1 [shape = 'u32[144,128]{1,0:T(1,128)}', space=vmem, size = 0x12000, scoped, tag = 'internal scratch']
  %s0 = inlined_call_operand.vmem [shape: f32[16,32], index: 0, kind: input, shape index: {}]
  %s1 = inlined_call_operand.vmem [shape: f32[16,16], index: 1, kind: input, shape index: {}]
  %s2 = inlined_call_operand.vmem [shape: f32[4,16], index: 2, kind: input, shape index: {}]
  %s3 = inlined_call_operand.vmem [shape: f32[32,16], index: 3, kind: input, shape index: {}]
  %s4 = inlined_call_operand.vmem [shape: f32[1,16], index: 4, kind: input, shape index: {}]
  %s5 = inlined_call_operand.vmem [shape: f32[16,16], index: 5, kind: input, shape index: {}]
  %s6 = inlined_call_operand.vmem [shape: f32[1,16], index: 6, kind: input, shape index: {}]
  %s7 = inlined_call_operand.vmem [shape: f32[16,32], index: 7, kind: input, shape index: {}]
  %s8 = inlined_call_operand.vmem [shape: f32[1,32], index: 8, kind: input, shape index: {}]
  %s9 = inlined_call_operand.vmem [shape: f32[16,16], index: 9, kind: input, shape index: {}]
  %s10 = inlined_call_operand.vmem [shape: f32[1,16], index: 10, kind: input, shape index: {}]
  %s11 = inlined_call_operand.vmem [shape: f32[16,4], index: 11, kind: input, shape index: {}]
  %s12 = inlined_call_operand.vmem [shape: f32[1,4], index: 12, kind: input, shape index: {}]
  %s13 = inlined_call_operand.vmem [shape: f32[16,32], index: 13, kind: output, shape index: {0}]
  %s14 = inlined_call_operand.hbm [shape: f32[2,16], index: 14, kind: output, shape index: {1}]
  %s15 = inlined_call_operand.vmem [shape: f32[4,4], index: 15, kind: output, shape index: {2}]
  %16 = xla_tuple %s13, %s14, %s15
  %s17 = sld [smem:[#allocation0]]
  $region78: #{quality_score_head_forward.1} parent=0
    _
  %s19 = ssub.s32 1, %s17
  %s20 = scalar_select 0, %s19, %s17
  $region1: #{quality_score_head_forward.1} parent=0
    #allocation2 [shape = 'u8[1024]{0}', space=vmem, size = 0x400, scoped, tag = 'output window, operand 1, single buffered']
    #allocation3 [shape = 's32[1]{0}', space=sflag, size = 0x4, scoped, tag = 'scoped memory for quality_score_head_forward.1']
    %21 = vsyncpa [#allocation3], 0
    // Predicated region
    $region2: #{quality_score_head_forward.1} parent=1 // pred_check
      _
    $region3: #{quality_score_head_forward.1} parent=1 // pred_check_branch
      %23 = sbr.rel (0) target = $region5
    $region4: #{quality_score_head_forward.1} parent=1 // pred_region
      _
    $region5: #{quality_score_head_forward.1} parent=1 // pred_fallthru
      _
    // Predicated region
    $region6: #{quality_score_head_forward.1} parent=1 // pred_check
      _
    $region7: #{quality_score_head_forward.1} parent=1 // pred_check_branch
      %25 = sbr.rel (0) target = $region9
    $region8: #{quality_score_head_forward.1} parent=1 // pred_region
      _
    $region9: #{quality_score_head_forward.1} parent=1 // pred_fallthru
      _
    // Predicated region
    $region10: #{quality_score_head_forward.1} parent=1 // pred_check
      _
    $region11: #{quality_score_head_forward.1} parent=1 // pred_check_branch
      %27 = sbr.rel (0) target = $region13
    $region12: #{quality_score_head_forward.1} parent=1 // pred_region
      _
    $region13: #{quality_score_head_forward.1} parent=1 // pred_fallthru
      _
    // Predicated region
    $region14: #{quality_score_head_forward.1} parent=1 // pred_check
      _
    $region15: #{quality_score_head_forward.1} parent=1 // pred_check_branch
      %29 = sbr.rel (0) target = $region17
    $region16: #{quality_score_head_forward.1} parent=1 // pred_region
      _
    $region17: #{quality_score_head_forward.1} parent=1 // pred_fallthru
      _
    // Predicated region
    $region18: #{quality_score_head_forward.1} parent=1 // pred_check
      _
    $region19: #{quality_score_head_forward.1} parent=1 // pred_check_branch
      %31 = sbr.rel (0) target = $region21
    $region20: #{quality_score_head_forward.1} parent=1 // pred_region
      _
    $region21: #{quality_score_head_forward.1} parent=1 // pred_fallthru
      _
    // Predicated region
    $region22: #{quality_score_head_forward.1} parent=1 // pred_check
      _
    $region23: #{quality_score_head_forward.1} parent=1 // pred_check_branch
      %33 = sbr.rel (0) target = $region25
    $region24: #{quality_score_head_forward.1} parent=1 // pred_region
      _
    $region25: #{quality_score_head_forward.1} parent=1 // pred_fallthru
      _
    // Predicated region
    $region26: #{quality_score_head_forward.1} parent=1 // pred_check
      _
    $region27: #{quality_score_head_forward.1} parent=1 // pred_check_branch
      %35 = sbr.rel (0) target = $region29
    $region28: #{quality_score_head_forward.1} parent=1 // pred_region
      _
    $region29: #{quality_score_head_forward.1} parent=1 // pred_fallthru
      _
    // Predicated region
    $region30: #{quality_score_head_forward.1} parent=1 // pred_check
      _
    $region31: #{quality_score_head_forward.1} parent=1 // pred_check_branch
      %37 = sbr.rel (0) target = $region33
    $region32: #{quality_score_head_forward.1} parent=1 // pred_region
      _
    $region33: #{quality_score_head_forward.1} parent=1 // pred_fallthru
      _
    // Predicated region
    $region34: #{quality_score_head_forward.1} parent=1 // pred_check
      _
    $region35: #{quality_score_head_forward.1} parent=1 // pred_check_branch
      %39 = sbr.rel (0) target = $region37
    $region36: #{quality_score_head_forward.1} parent=1 // pred_region
      _
    $region37: #{quality_score_head_forward.1} parent=1 // pred_fallthru
      _
    // Predicated region
    $region38: #{quality_score_head_forward.1} parent=1 // pred_check
      _
    $region39: #{quality_score_head_forward.1} parent=1 // pred_check_branch
      %41 = sbr.rel (0) target = $region41
    $region40: #{quality_score_head_forward.1} parent=1 // pred_region
      _
    $region41: #{quality_score_head_forward.1} parent=1 // pred_fallthru
      _
    // Predicated region
    $region42: #{quality_score_head_forward.1} parent=1 // pred_check
      _
    $region43: #{quality_score_head_forward.1} parent=1 // pred_check_branch
      %43 = sbr.rel (0) target = $region45
    $region44: #{quality_score_head_forward.1} parent=1 // pred_region
      _
    $region45: #{quality_score_head_forward.1} parent=1 // pred_fallthru
      _
    // Predicated region
    $region46: #{quality_score_head_forward.1} parent=1 // pred_check
      _
    $region47: #{quality_score_head_forward.1} parent=1 // pred_check_branch
      %45 = sbr.rel (0) target = $region49
    $region48: #{quality_score_head_forward.1} parent=1 // pred_region
      _
    $region49: #{quality_score_head_forward.1} parent=1 // pred_fallthru
      _
    // Predicated region
    $region50: #{quality_score_head_forward.1} parent=1 // pred_check
      _
    $region51: #{quality_score_head_forward.1} parent=1 // pred_check_branch
      %47 = sbr.rel (0) target = $region53
    $region52: #{quality_score_head_forward.1} parent=1 // pred_region
      _
    $region53: #{quality_score_head_forward.1} parent=1 // pred_fallthru
      _
    %v48 = vld [vmem:[%s0] sm:$0xff]
    %v49 = vld [vmem:[%s0 + $0x8] sm:$0xff]
    %v50 = vld [vmem:[%s3] sm:$0xff]
    %v51 = vld [vmem:[%s3 + $0x8] sm:$0xff]
    %v52 = vld [vmem:[%s3 + $0x10] sm:$0xff]
    %v53 = vld [vmem:[%s3 + $0x18] sm:$0xff]
    %v54 = vld [vmem:[%s4] sm:$0x1]
    %v56 = vlaneseq
    %v57 = vshrl.u32 %v56, 7
    %v58 = vsub.s32 0, %v57
    %v59 = vrot.slane %v54, %v58
    %vm61 = vcmask 261120
    %v63 = vsel %vm61, %v48, 0
    %v66 = vsel %vm61, %v49, 0
    %68 = vmatprep.subr.mxu0 0.0
    %69 = vmatpush1.msra.mxu0 0.0
    %70 = vmatprep.subr.mxu0 0.0
    %71 = vmatpush1.msra.mxu0 0.0
    %72 = vmatprep.subr.mxu0 0.0
    %73 = vmatpush1.msra.mxu0 0.0
    %74 = vmatprep.subr.mxu0 0.0
    %75 = vmatpush1.msra.mxu0 0.0
    %76 = vmatprep.subr.mxu0 0.0
    %77 = vmatpush1.msra.mxu0 0.0
    %78 = vmatprep.subr.mxu0 0.0
    %79 = vmatpush1.msra.mxu0 0.0
    %80 = vmatprep.subr.mxu0 0.0
    %81 = vmatpush1.msra.mxu0 0.0
    %82 = vmatprep.subr.mxu0 0.0
    %83 = vmatpush1.msra.mxu0 0.0
    %84 = vmatprep.subr.mxu0 0.0
    %85 = vmatpush1.msra.mxu0 0.0
    %86 = vmatprep.subr.mxu0 0.0
    %87 = vmatpush1.msra.mxu0 0.0
    %88 = vmatprep.subr.mxu0 0.0
    %89 = vmatpush1.msra.mxu0 0.0
    %90 = vmatprep.subr.mxu0 0.0
    %91 = vmatpush1.msra.mxu0 0.0
    %92 = vmatprep.subr.mxu0 0.0
    %93 = vmatpush1.msra.mxu0 %v53
    %94 = vmatprep.subr.mxu0 0.0
    %95 = vmatpush1.msra.mxu0 %v52
    %96 = vmatprep.subr.mxu0 0.0
    %97 = vmatpush1.msra.mxu0 %v51
    %98 = vmatprep.subr.mxu0 0.0
    %99 = vmatpush1.msra.mxu0 %v50
    %100 = vmatprep.subr.mxu0 0.0
    %101 = vmatpush2.msra.mxu0 0.0
    %102 = vmatprep.subr.mxu0 0.0
    %103 = vmatpush2.msra.mxu0 0.0
    %104 = vmatprep.subr.mxu0 0.0
    %105 = vmatpush2.msra.mxu0 0.0
    %106 = vmatprep.subr.mxu0 0.0
    %107 = vmatpush2.msra.mxu0 0.0
    %108 = vmatprep.subr.mxu0 0.0
    %109 = vmatpush2.msra.mxu0 0.0
    %110 = vmatprep.subr.mxu0 0.0
    %111 = vmatpush2.msra.mxu0 0.0
    %112 = vmatprep.subr.mxu0 0.0
    %113 = vmatpush2.msra.mxu0 0.0
    %114 = vmatprep.subr.mxu0 0.0
    %115 = vmatpush2.msra.mxu0 0.0
    %116 = vmatprep.subr.mxu0 0.0
    %117 = vmatpush2.msra.mxu0 0.0
    %118 = vmatprep.subr.mxu0 0.0
    %119 = vmatpush2.msra.mxu0 0.0
    %120 = vmatprep.subr.mxu0 0.0
    %121 = vmatpush2.msra.mxu0 0.0
    %122 = vmatprep.subr.mxu0 0.0
    %123 = vmatpush2.msra.mxu0 0.0
    %124 = vmatprep.subr.mxu0 0.0
    %125 = vmatpush2.msra.mxu0 0.0
    %126 = vmatprep.subr.mxu0 0.0
    %127 = vmatpush2.msra.mxu0 0.0
    %128 = vmatprep.subr.mxu0 0.0
    %129 = vmatpush2.msra.mxu0 0.0
    %130 = vmatprep.subr.mxu0 0.0
    %131 = vmatpush2.msra.mxu0 0.0
    %132 = vmatprep.mubr.f32.mxu0 0.0
    %133 = vmatmul.mubr.f32.gmra.mxu0 %v63
    %v134 = vpop.f32.mrf.mxu0
    %v135 = vadd.f32 %v59, %v134
    %v136 = vpop.f32.mrf.mxu0
    %137 = vmatprep.mubr.f32.mxu0 0.0
    %138 = vmatmul.mubr.f32.gmra.mxu0 %v66
    %v139 = vpop.f32.mrf.mxu0
    %v140 = vadd.f32 %v59, %v139
    %v141 = vpop.f32.mrf.mxu0
    %142 = vdwg.mxu0
    %v143 = vmax.f32 %v135, 0.0
    %v144 = vmax.f32 %v140, 0.0
    %v145 = vld [vmem:[%s5] sm:$0xff]
    %v146 = vld [vmem:[%s5 + $0x8] sm:$0xff]
    %v147 = vld [vmem:[%s6] sm:$0x1]
    %v149 = vlaneseq
    %v150 = vshrl.u32 %v149, 7
    %v151 = vsub.s32 0, %v150
    %v152 = vrot.slane %v147, %v151
    %vm154 = vcmask 130048
    %v156 = vsel %vm154, %v143, 0
    %v159 = vsel %vm154, %v144, 0
    %161 = vmatprep.subr.mxu0 0.0
    %162 = vmatpush1.msra.mxu0 0.0
    %163 = vmatprep.subr.mxu0 0.0
    %164 = vmatpush1.msra.mxu0 0.0
    %165 = vmatprep.subr.mxu0 0.0
    %166 = vmatpush1.msra.mxu0 0.0
    %167 = vmatprep.subr.mxu0 0.0
    %168 = vmatpush1.msra.mxu0 0.0
    %169 = vmatprep.subr.mxu0 0.0
    %170 = vmatpush1.msra.mxu0 0.0
    %171 = vmatprep.subr.mxu0 0.0
    %172 = vmatpush1.msra.mxu0 0.0
    %173 = vmatprep.subr.mxu0 0.0
    %174 = vmatpush1.msra.mxu0 0.0
    %175 = vmatprep.subr.mxu0 0.0
    %176 = vmatpush1.msra.mxu0 0.0
    %177 = vmatprep.subr.mxu0 0.0
    %178 = vmatpush1.msra.mxu0 0.0
    %179 = vmatprep.subr.mxu0 0.0
    %180 = vmatpush1.msra.mxu0 0.0
    %181 = vmatprep.subr.mxu0 0.0
    %182 = vmatpush1.msra.mxu0 0.0
    %183 = vmatprep.subr.mxu0 0.0
    %184 = vmatpush1.msra.mxu0 0.0
    %185 = vmatprep.subr.mxu0 0.0
    %186 = vmatpush1.msra.mxu0 0.0
    %187 = vmatprep.subr.mxu0 0.0
    %188 = vmatpush1.msra.mxu0 0.0
    %189 = vmatprep.subr.mxu0 0.0
    %190 = vmatpush1.msra.mxu0 %v146
    %191 = vmatprep.subr.mxu0 0.0
    %192 = vmatpush1.msra.mxu0 %v145
    %193 = vmatprep.subr.mxu0 0.0
    %194 = vmatpush2.msra.mxu0 0.0
    %195 = vmatprep.subr.mxu0 0.0
    %196 = vmatpush2.msra.mxu0 0.0
    %197 = vmatprep.subr.mxu0 0.0
    %198 = vmatpush2.msra.mxu0 0.0
    %199 = vmatprep.subr.mxu0 0.0
    %200 = vmatpush2.msra.mxu0 0.0
    %201 = vmatprep.subr.mxu0 0.0
    %202 = vmatpush2.msra.mxu0 0.0
    %203 = vmatprep.subr.mxu0 0.0
    %204 = vmatpush2.msra.mxu0 0.0
    %205 = vmatprep.subr.mxu0 0.0
    %206 = vmatpush2.msra.mxu0 0.0
    %207 = vmatprep.subr.mxu0 0.0
    %208 = vmatpush2.msra.mxu0 0.0
    %209 = vmatprep.subr.mxu0 0.0
    %210 = vmatpush2.msra.mxu0 0.0
    %211 = vmatprep.subr.mxu0 0.0
    %212 = vmatpush2.msra.mxu0 0.0
    %213 = vmatprep.subr.mxu0 0.0
    %214 = vmatpush2.msra.mxu0 0.0
    %215 = vmatprep.subr.mxu0 0.0
    %216 = vmatpush2.msra.mxu0 0.0
    %217 = vmatprep.subr.mxu0 0.0
    %218 = vmatpush2.msra.mxu0 0.0
    %219 = vmatprep.subr.mxu0 0.0
    %220 = vmatpush2.msra.mxu0 0.0
    %221 = vmatprep.subr.mxu0 0.0
    %222 = vmatpush2.msra.mxu0 0.0
    %223 = vmatprep.subr.mxu0 0.0
    %224 = vmatpush2.msra.mxu0 0.0
    %225 = vmatprep.mubr.f32.mxu0 0.0
    %226 = vmatmul.mubr.f32.gmra.mxu0 %v156
    %v227 = vpop.f32.mrf.mxu0
    %v228 = vadd.f32 %v152, %v227
    %v229 = vpop.f32.mrf.mxu0
    %230 = vmatprep.mubr.f32.mxu0 0.0
    %231 = vmatmul.mubr.f32.gmra.mxu0 %v159
    %v232 = vpop.f32.mrf.mxu0
    %v233 = vadd.f32 %v152, %v232
    %v234 = vpop.f32.mrf.mxu0
    %235 = vdwg.mxu0
    %v236 = vmax.f32 %v228, 0.0
    %v237 = vmax.f32 %v233, 0.0
    %v238 = vld [vmem:[%s7] sm:$0xff]
    %v239 = vld [vmem:[%s7 + $0x8] sm:$0xff]
    %v240 = vld [vmem:[%s8] sm:$0x1]
    %v242 = vlaneseq
    %v243 = vshrl.u32 %v242, 7
    %v244 = vsub.s32 0, %v243
    %v245 = vrot.slane %v240, %v244
    %v248 = vsel %vm154, %v236, 0
    %v251 = vsel %vm154, %v237, 0
    %253 = vmatprep.subr.mxu0 0.0
    %254 = vmatpush1.msra.mxu0 0.0
    %255 = vmatprep.subr.mxu0 0.0
    %256 = vmatpush1.msra.mxu0 0.0
    %257 = vmatprep.subr.mxu0 0.0
    %258 = vmatpush1.msra.mxu0 0.0
    %259 = vmatprep.subr.mxu0 0.0
    %260 = vmatpush1.msra.mxu0 0.0
    %261 = vmatprep.subr.mxu0 0.0
    %262 = vmatpush1.msra.mxu0 0.0
    %263 = vmatprep.subr.mxu0 0.0
    %264 = vmatpush1.msra.mxu0 0.0
    %265 = vmatprep.subr.mxu0 0.0
    %266 = vmatpush1.msra.mxu0 0.0
    %267 = vmatprep.subr.mxu0 0.0
    %268 = vmatpush1.msra.mxu0 0.0
    %269 = vmatprep.subr.mxu0 0.0
    %270 = vmatpush1.msra.mxu0 0.0
    %271 = vmatprep.subr.mxu0 0.0
    %272 = vmatpush1.msra.mxu0 0.0
    %273 = vmatprep.subr.mxu0 0.0
    %274 = vmatpush1.msra.mxu0 0.0
    %275 = vmatprep.subr.mxu0 0.0
    %276 = vmatpush1.msra.mxu0 0.0
    %277 = vmatprep.subr.mxu0 0.0
    %278 = vmatpush1.msra.mxu0 0.0
    %279 = vmatprep.subr.mxu0 0.0
    %280 = vmatpush1.msra.mxu0 0.0
    %281 = vmatprep.subr.mxu0 0.0
    %282 = vmatpush1.msra.mxu0 %v239
    %283 = vmatprep.subr.mxu0 0.0
    %284 = vmatpush1.msra.mxu0 %v238
    %285 = vmatprep.subr.mxu0 0.0
    %286 = vmatpush2.msra.mxu0 0.0
    %287 = vmatprep.subr.mxu0 0.0
    %288 = vmatpush2.msra.mxu0 0.0
    %289 = vmatprep.subr.mxu0 0.0
    %290 = vmatpush2.msra.mxu0 0.0
    %291 = vmatprep.subr.mxu0 0.0
    %292 = vmatpush2.msra.mxu0 0.0
    %293 = vmatprep.subr.mxu0 0.0
    %294 = vmatpush2.msra.mxu0 0.0
    %295 = vmatprep.subr.mxu0 0.0
    %296 = vmatpush2.msra.mxu0 0.0
    %297 = vmatprep.subr.mxu0 0.0
    %298 = vmatpush2.msra.mxu0 0.0
    %299 = vmatprep.subr.mxu0 0.0
    %300 = vmatpush2.msra.mxu0 0.0
    %301 = vmatprep.subr.mxu0 0.0
    %302 = vmatpush2.msra.mxu0 0.0
    %303 = vmatprep.subr.mxu0 0.0
    %304 = vmatpush2.msra.mxu0 0.0
    %305 = vmatprep.subr.mxu0 0.0
    %306 = vmatpush2.msra.mxu0 0.0
    %307 = vmatprep.subr.mxu0 0.0
    %308 = vmatpush2.msra.mxu0 0.0
    %309 = vmatprep.subr.mxu0 0.0
    %310 = vmatpush2.msra.mxu0 0.0
    %311 = vmatprep.subr.mxu0 0.0
    %312 = vmatpush2.msra.mxu0 0.0
    %313 = vmatprep.subr.mxu0 0.0
    %314 = vmatpush2.msra.mxu0 0.0
    %315 = vmatprep.subr.mxu0 0.0
    %316 = vmatpush2.msra.mxu0 0.0
    %317 = vmatprep.mubr.f32.mxu0 0.0
    %318 = vmatmul.mubr.f32.gmra.mxu0 %v248
    %v319 = vpop.f32.mrf.mxu0
    %v320 = vadd.f32 %v245, %v319
    %v321 = vpop.f32.mrf.mxu0
    %322 = vmatprep.mubr.f32.mxu0 0.0
    %323 = vmatmul.mubr.f32.gmra.mxu0 %v251
    %v324 = vpop.f32.mrf.mxu0
    %v325 = vadd.f32 %v245, %v324
    %v326 = vpop.f32.mrf.mxu0
    %327 = vdwg.mxu0
    %v328 = vlaneseq
    %v329 = vand.u32 %v328, 127
    %vm330 = vcmp.lt.s32.totalorder %v329, 16
    %v331 = vmul.f32 %v320, 1.442695
    %v332 = vpow.pop %v331
    %v333 = vmul.f32 %v325, 1.442695
    %v334 = vpow.pop %v333
    %v335 = vsel %vm330, %v320, %v332
    %v336 = vsel %vm330, %v325, %v334
    %337 = vst.msk [vmem:[%s13] sm:$0xff] %vm61, %v335
    %338 = vst.msk [vmem:[%s13 + $0x8] sm:$0xff] %vm61, %v336
    %v339 = vlaneseq
    %v340 = vshrl.u32 %v339, 7
    %v341 = vmul.u32 %v340, 8
    %vm342 = vcmp.ge.s32.totalorder %v329, %v341
    %v343 = vadd.s32 %v340, 1
    %v344 = vmul.u32 %v343, 8
    %vm345 = vcmp.lt.s32.totalorder %v329, %v344
    %vm346 = vmand %vm342, %vm345
    %v347 = vsel %vm346, 1, 0
    %v348 = vcvt.s32.f32 %v347
    %v349 = vld [vmem:[%s1] sm:$0xff]
    %v350 = vld [vmem:[%s1 + $0x8] sm:$0xff]
    %v351 = vadd.f32 %v335, 1e-06
    %v352 = vadd.f32 %v336, 1e-06
    %355 = vrot.lane.b32.xlu0 %v351, 112
    %v356 = vpop.permute.xlu0 %355
    %357 = vrot.lane.b32.xlu0 %v352, 112
    %v358 = vpop.permute.xlu0 %357
    %v361 = vrcp.pop %v356
    %v362 = vmul.f32 %v349, %v361
    %v363 = vrcp.pop %v358
    %v364 = vmul.f32 %v350, %v363
    %v366 = vsel %vm154, %v348, 0
    %368 = vmatprep.subr.mxu0 0.0
    %369 = vmatpush1.msra.mxu0 0.0
    %370 = vmatprep.subr.mxu0 0.0
    %371 = vmatpush1.msra.mxu0 0.0
    %372 = vmatprep.subr.mxu0 0.0
    %373 = vmatpush1.msra.mxu0 0.0
    %374 = vmatprep.subr.mxu0 0.0
    %375 = vmatpush1.msra.mxu0 0.0
    %376 = vmatprep.subr.mxu0 0.0
    %377 = vmatpush1.msra.mxu0 0.0
    %378 = vmatprep.subr.mxu0 0.0
    %379 = vmatpush1.msra.mxu0 0.0
    %380 = vmatprep.subr.mxu0 0.0
    %381 = vmatpush1.msra.mxu0 0.0
    %382 = vmatprep.subr.mxu0 0.0
    %383 = vmatpush1.msra.mxu0 0.0
    %384 = vmatprep.subr.mxu0 0.0
    %385 = vmatpush1.msra.mxu0 0.0
    %386 = vmatprep.subr.mxu0 0.0
    %387 = vmatpush1.msra.mxu0 0.0
    %388 = vmatprep.subr.mxu0 0.0
    %389 = vmatpush1.msra.mxu0 0.0
    %390 = vmatprep.subr.mxu0 0.0
    %391 = vmatpush1.msra.mxu0 0.0
    %392 = vmatprep.subr.mxu0 0.0
    %393 = vmatpush1.msra.mxu0 0.0
    %394 = vmatprep.subr.mxu0 0.0
    %395 = vmatpush1.msra.mxu0 0.0
    %396 = vmatprep.subr.mxu0 0.0
    %397 = vmatpush1.msra.mxu0 %v364
    %398 = vmatprep.subr.mxu0 0.0
    %399 = vmatpush1.msra.mxu0 %v362
    %400 = vmatprep.subr.mxu0 0.0
    %401 = vmatpush2.msra.mxu0 0.0
    %402 = vmatprep.subr.mxu0 0.0
    %403 = vmatpush2.msra.mxu0 0.0
    %404 = vmatprep.subr.mxu0 0.0
    %405 = vmatpush2.msra.mxu0 0.0
    %406 = vmatprep.subr.mxu0 0.0
    %407 = vmatpush2.msra.mxu0 0.0
    %408 = vmatprep.subr.mxu0 0.0
    %409 = vmatpush2.msra.mxu0 0.0
    %410 = vmatprep.subr.mxu0 0.0
    %411 = vmatpush2.msra.mxu0 0.0
    %412 = vmatprep.subr.mxu0 0.0
    %413 = vmatpush2.msra.mxu0 0.0
    %414 = vmatprep.subr.mxu0 0.0
    %415 = vmatpush2.msra.mxu0 0.0
    %416 = vmatprep.subr.mxu0 0.0
    %417 = vmatpush2.msra.mxu0 0.0
    %418 = vmatprep.subr.mxu0 0.0
    %419 = vmatpush2.msra.mxu0 0.0
    %420 = vmatprep.subr.mxu0 0.0
    %421 = vmatpush2.msra.mxu0 0.0
    %422 = vmatprep.subr.mxu0 0.0
    %423 = vmatpush2.msra.mxu0 0.0
    %424 = vmatprep.subr.mxu0 0.0
    %425 = vmatpush2.msra.mxu0 0.0
    %426 = vmatprep.subr.mxu0 0.0
    %427 = vmatpush2.msra.mxu0 0.0
    %428 = vmatprep.subr.mxu0 0.0
    %429 = vmatpush2.msra.mxu0 0.0
    %430 = vmatprep.subr.mxu0 0.0
    %431 = vmatpush2.msra.mxu0 0.0
    %432 = vmatprep.mubr.f32.mxu0 0.0
    %433 = vmatmul.mubr.f32.gmra.mxu0 %v366
    %v434 = vpop.f32.mrf.mxu0
    %v435 = vadd.f32 1e-06, %v434
    %v436 = vpop.f32.mrf.mxu0
    %437 = vdwg.mxu0
    %v438 = vrsqrt.pop %v435
    %v439 = vmul.f32 %v438, %v438
    %v440 = vmul.f32 %v362, %v335
    %v441 = vmul.f32 %v364, %v336
    %442 = vmatprep.subr.mxu0 0.0
    %443 = vmatpush1.msra.mxu0 0.0
    %444 = vmatprep.subr.mxu0 0.0
    %445 = vmatpush1.msra.mxu0 0.0
    %446 = vmatprep.subr.mxu0 0.0
    %447 = vmatpush1.msra.mxu0 0.0
    %448 = vmatprep.subr.mxu0 0.0
    %449 = vmatpush1.msra.mxu0 0.0
    %450 = vmatprep.subr.mxu0 0.0
    %451 = vmatpush1.msra.mxu0 0.0
    %452 = vmatprep.subr.mxu0 0.0
    %453 = vmatpush1.msra.mxu0 0.0
    %454 = vmatprep.subr.mxu0 0.0
    %455 = vmatpush1.msra.mxu0 0.0
    %456 = vmatprep.subr.mxu0 0.0
    %457 = vmatpush1.msra.mxu0 0.0
    %458 = vmatprep.subr.mxu0 0.0
    %459 = vmatpush1.msra.mxu0 0.0
    %460 = vmatprep.subr.mxu0 0.0
    %461 = vmatpush1.msra.mxu0 0.0
    %462 = vmatprep.subr.mxu0 0.0
    %463 = vmatpush1.msra.mxu0 0.0
    %464 = vmatprep.subr.mxu0 0.0
    %465 = vmatpush1.msra.mxu0 0.0
    %466 = vmatprep.subr.mxu0 0.0
    %467 = vmatpush1.msra.mxu0 0.0
    %468 = vmatprep.subr.mxu0 0.0
    %469 = vmatpush1.msra.mxu0 0.0
    %470 = vmatprep.subr.mxu0 0.0
    %471 = vmatpush1.msra.mxu0 %v441
    %472 = vmatprep.subr.mxu0 0.0
    %473 = vmatpush1.msra.mxu0 %v440
    %474 = vmatprep.subr.mxu0 0.0
    %475 = vmatpush2.msra.mxu0 0.0
    %476 = vmatprep.subr.mxu0 0.0
    %477 = vmatpush2.msra.mxu0 0.0
    %478 = vmatprep.subr.mxu0 0.0
    %479 = vmatpush2.msra.mxu0 0.0
    %480 = vmatprep.subr.mxu0 0.0
    %481 = vmatpush2.msra.mxu0 0.0
    %482 = vmatprep.subr.mxu0 0.0
    %483 = vmatpush2.msra.mxu0 0.0
    %484 = vmatprep.subr.mxu0 0.0
    %485 = vmatpush2.msra.mxu0 0.0
    %486 = vmatprep.subr.mxu0 0.0
    %487 = vmatpush2.msra.mxu0 0.0
    %488 = vmatprep.subr.mxu0 0.0
    %489 = vmatpush2.msra.mxu0 0.0
    %490 = vmatprep.subr.mxu0 0.0
    %491 = vmatpush2.msra.mxu0 0.0
    %492 = vmatprep.subr.mxu0 0.0
    %493 = vmatpush2.msra.mxu0 0.0
    %494 = vmatprep.subr.mxu0 0.0
    %495 = vmatpush2.msra.mxu0 0.0
    %496 = vmatprep.subr.mxu0 0.0
    %497 = vmatpush2.msra.mxu0 0.0
    %498 = vmatprep.subr.mxu0 0.0
    %499 = vmatpush2.msra.mxu0 0.0
    %500 = vmatprep.subr.mxu0 0.0
    %501 = vmatpush2.msra.mxu0 0.0
    %502 = vmatprep.subr.mxu0 0.0
    %503 = vmatpush2.msra.mxu0 0.0
    %504 = vmatprep.subr.mxu0 0.0
    %505 = vmatpush2.msra.mxu0 0.0
    %506 = vmatprep.mubr.f32.mxu0 0.0
    %507 = vmatmul.mubr.f32.gmra.mxu0 %v366
    %v508 = vpop.f32.mrf.mxu0
    %v509 = vadd.f32 0.0, %v508
    %v510 = vpop.f32.mrf.mxu0
    %511 = vdwg.mxu0
    %v512 = vmul.f32 %v439, %v509
    %vm513 = vcmask 123904
    %514 = vst.msk [vmem:[#allocation2] sm:$0x3] %vm513, %v438
    %v515 = vmul.u32 %v329, 2
    %vm516 = vcmp.ge.s32.totalorder %v340, %v515
    %v517 = vadd.s32 %v329, 1
    %v518 = vmul.u32 %v517, 2
    %vm519 = vcmp.lt.s32.totalorder %v340, %v518
    %vm520 = vmand %vm516, %vm519
    %v521 = vsel %vm520, 1, 0
    %v522 = vcvt.s32.f32 %v521
    %vm523 = vcmask 15360
    %v525 = vsel %vm523, %v522, 0
    %vm527 = vcmask 1041408
    %v529 = vsel %vm527, %v438, 0
    %531 = vmatprep.subr.mxu0 0.0
    %532 = vmatpush1.msra.mxu0 0.0
    %533 = vmatprep.subr.mxu0 0.0
    %534 = vmatpush1.msra.mxu0 0.0
    %535 = vmatprep.subr.mxu0 0.0
    %536 = vmatpush1.msra.mxu0 0.0
    %537 = vmatprep.subr.mxu0 0.0
    %538 = vmatpush1.msra.mxu0 0.0
    %539 = vmatprep.subr.mxu0 0.0
    %540 = vmatpush1.msra.mxu0 0.0
    %541 = vmatprep.subr.mxu0 0.0
    %542 = vmatpush1.msra.mxu0 0.0
    %543 = vmatprep.subr.mxu0 0.0
    %544 = vmatpush1.msra.mxu0 0.0
    %545 = vmatprep.subr.mxu0 0.0
    %546 = vmatpush1.msra.mxu0 0.0
    %547 = vmatprep.subr.mxu0 0.0
    %548 = vmatpush1.msra.mxu0 0.0
    %549 = vmatprep.subr.mxu0 0.0
    %550 = vmatpush1.msra.mxu0 0.0
    %551 = vmatprep.subr.mxu0 0.0
    %552 = vmatpush1.msra.mxu0 0.0
    %553 = vmatprep.subr.mxu0 0.0
    %554 = vmatpush1.msra.mxu0 0.0
    %555 = vmatprep.subr.mxu0 0.0
    %556 = vmatpush1.msra.mxu0 0.0
    %557 = vmatprep.subr.mxu0 0.0
    %558 = vmatpush1.msra.mxu0 0.0
    %559 = vmatprep.subr.mxu0 0.0
    %560 = vmatpush1.msra.mxu0 0.0
    %561 = vmatprep.subr.mxu0 0.0
    %562 = vmatpush1.msra.mxu0 %v529
    %563 = vmatprep.subr.mxu0 0.0
    %564 = vmatpush2.msra.mxu0 0.0
    %565 = vmatprep.subr.mxu0 0.0
    %566 = vmatpush2.msra.mxu0 0.0
    %567 = vmatprep.subr.mxu0 0.0
    %568 = vmatpush2.msra.mxu0 0.0
    %569 = vmatprep.subr.mxu0 0.0
    %570 = vmatpush2.msra.mxu0 0.0
    %571 = vmatprep.subr.mxu0 0.0
    %572 = vmatpush2.msra.mxu0 0.0
    %573 = vmatprep.subr.mxu0 0.0
    %574 = vmatpush2.msra.mxu0 0.0
    %575 = vmatprep.subr.mxu0 0.0
    %576 = vmatpush2.msra.mxu0 0.0
    %577 = vmatprep.subr.mxu0 0.0
    %578 = vmatpush2.msra.mxu0 0.0
    %579 = vmatprep.subr.mxu0 0.0
    %580 = vmatpush2.msra.mxu0 0.0
    %581 = vmatprep.subr.mxu0 0.0
    %582 = vmatpush2.msra.mxu0 0.0
    %583 = vmatprep.subr.mxu0 0.0
    %584 = vmatpush2.msra.mxu0 0.0
    %585 = vmatprep.subr.mxu0 0.0
    %586 = vmatpush2.msra.mxu0 0.0
    %587 = vmatprep.subr.mxu0 0.0
    %588 = vmatpush2.msra.mxu0 0.0
    %589 = vmatprep.subr.mxu0 0.0
    %590 = vmatpush2.msra.mxu0 0.0
    %591 = vmatprep.subr.mxu0 0.0
    %592 = vmatpush2.msra.mxu0 0.0
    %593 = vmatprep.subr.mxu0 0.0
    %594 = vmatpush2.msra.mxu0 0.0
    %595 = vmatprep.mubr.f32.mxu0 0.0
    %596 = vmatmul.mubr.f32.gmra.mxu0 %v525
    %v597 = vpop.f32.mrf.mxu0
    %v598 = vadd.f32 0.0, %v597
    %v599 = vpop.f32.mrf.mxu0
    %600 = vdwg.mxu0
    %v601 = vld [vmem:[%s2] sm:$0xf]
    %v602 = vmul.f32 %v598, %v601
    %v604 = vsel %vm527, %v512, 0
    %606 = vmatprep.subr.mxu0 0.0
    %607 = vmatpush1.msra.mxu0 0.0
    %608 = vmatprep.subr.mxu0 0.0
    %609 = vmatpush1.msra.mxu0 0.0
    %610 = vmatprep.subr.mxu0 0.0
    %611 = vmatpush1.msra.mxu0 0.0
    %612 = vmatprep.subr.mxu0 0.0
    %613 = vmatpush1.msra.mxu0 0.0
    %614 = vmatprep.subr.mxu0 0.0
    %615 = vmatpush1.msra.mxu0 0.0
    %616 = vmatprep.subr.mxu0 0.0
    %617 = vmatpush1.msra.mxu0 0.0
    %618 = vmatprep.subr.mxu0 0.0
    %619 = vmatpush1.msra.mxu0 0.0
    %620 = vmatprep.subr.mxu0 0.0
    %621 = vmatpush1.msra.mxu0 0.0
    %622 = vmatprep.subr.mxu0 0.0
    %623 = vmatpush1.msra.mxu0 0.0
    %624 = vmatprep.subr.mxu0 0.0
    %625 = vmatpush1.msra.mxu0 0.0
    %626 = vmatprep.subr.mxu0 0.0
    %627 = vmatpush1.msra.mxu0 0.0
    %628 = vmatprep.subr.mxu0 0.0
    %629 = vmatpush1.msra.mxu0 0.0
    %630 = vmatprep.subr.mxu0 0.0
    %631 = vmatpush1.msra.mxu0 0.0
    %632 = vmatprep.subr.mxu0 0.0
    %633 = vmatpush1.msra.mxu0 0.0
    %634 = vmatprep.subr.mxu0 0.0
    %635 = vmatpush1.msra.mxu0 0.0
    %636 = vmatprep.subr.mxu0 0.0
    %637 = vmatpush1.msra.mxu0 %v604
    %638 = vmatprep.subr.mxu0 0.0
    %639 = vmatpush2.msra.mxu0 0.0
    %640 = vmatprep.subr.mxu0 0.0
    %641 = vmatpush2.msra.mxu0 0.0
    %642 = vmatprep.subr.mxu0 0.0
    %643 = vmatpush2.msra.mxu0 0.0
    %644 = vmatprep.subr.mxu0 0.0
    %645 = vmatpush2.msra.mxu0 0.0
    %646 = vmatprep.subr.mxu0 0.0
    %647 = vmatpush2.msra.mxu0 0.0
    %648 = vmatprep.subr.mxu0 0.0
    %649 = vmatpush2.msra.mxu0 0.0
    %650 = vmatprep.subr.mxu0 0.0
    %651 = vmatpush2.msra.mxu0 0.0
    %652 = vmatprep.subr.mxu0 0.0
    %653 = vmatpush2.msra.mxu0 0.0
    %654 = vmatprep.subr.mxu0 0.0
    %655 = vmatpush2.msra.mxu0 0.0
    %656 = vmatprep.subr.mxu0 0.0
    %657 = vmatpush2.msra.mxu0 0.0
    %658 = vmatprep.subr.mxu0 0.0
    %659 = vmatpush2.msra.mxu0 0.0
    %660 = vmatprep.subr.mxu0 0.0
    %661 = vmatpush2.msra.mxu0 0.0
    %662 = vmatprep.subr.mxu0 0.0
    %663 = vmatpush2.msra.mxu0 0.0
    %664 = vmatprep.subr.mxu0 0.0
    %665 = vmatpush2.msra.mxu0 0.0
    %666 = vmatprep.subr.mxu0 0.0
    %667 = vmatpush2.msra.mxu0 0.0
    %668 = vmatprep.subr.mxu0 0.0
    %669 = vmatpush2.msra.mxu0 0.0
    %670 = vmatprep.mubr.f32.mxu0 0.0
    %671 = vmatmul.mubr.f32.gmra.mxu0 %v525
    %v672 = vpop.f32.mrf.mxu0
    %v673 = vadd.f32 %v602, %v672
    %v674 = vpop.f32.mrf.mxu0
    %675 = vdwg.mxu0
    %v676 = vld [vmem:[%s9] sm:$0xff]
    %v677 = vld [vmem:[%s9 + $0x8] sm:$0xff]
    %v678 = vld [vmem:[%s10] sm:$0x1]
    %v680 = vlaneseq
    %v681 = vshrl.u32 %v680, 7
    %v682 = vsub.s32 0, %v681
    %v683 = vrot.slane %v678, %v682
    %v686 = vsel %vm154, %v673, 0
    %688 = vmatprep.subr.mxu0 0.0
    %689 = vmatpush1.msra.mxu0 0.0
    %690 = vmatprep.subr.mxu0 0.0
    %691 = vmatpush1.msra.mxu0 0.0
    %692 = vmatprep.subr.mxu0 0.0
    %693 = vmatpush1.msra.mxu0 0.0
    %694 = vmatprep.subr.mxu0 0.0
    %695 = vmatpush1.msra.mxu0 0.0
    %696 = vmatprep.subr.mxu0 0.0
    %697 = vmatpush1.msra.mxu0 0.0
    %698 = vmatprep.subr.mxu0 0.0
    %699 = vmatpush1.msra.mxu0 0.0
    %700 = vmatprep.subr.mxu0 0.0
    %701 = vmatpush1.msra.mxu0 0.0
    %702 = vmatprep.subr.mxu0 0.0
    %703 = vmatpush1.msra.mxu0 0.0
    %704 = vmatprep.subr.mxu0 0.0
    %705 = vmatpush1.msra.mxu0 0.0
    %706 = vmatprep.subr.mxu0 0.0
    %707 = vmatpush1.msra.mxu0 0.0
    %708 = vmatprep.subr.mxu0 0.0
    %709 = vmatpush1.msra.mxu0 0.0
    %710 = vmatprep.subr.mxu0 0.0
    %711 = vmatpush1.msra.mxu0 0.0
    %712 = vmatprep.subr.mxu0 0.0
    %713 = vmatpush1.msra.mxu0 0.0
    %714 = vmatprep.subr.mxu0 0.0
    %715 = vmatpush1.msra.mxu0 0.0
    %716 = vmatprep.subr.mxu0 0.0
    %717 = vmatpush1.msra.mxu0 %v677
    %718 = vmatprep.subr.mxu0 0.0
    %719 = vmatpush1.msra.mxu0 %v676
    %720 = vmatprep.subr.mxu0 0.0
    %721 = vmatpush2.msra.mxu0 0.0
    %722 = vmatprep.subr.mxu0 0.0
    %723 = vmatpush2.msra.mxu0 0.0
    %724 = vmatprep.subr.mxu0 0.0
    %725 = vmatpush2.msra.mxu0 0.0
    %726 = vmatprep.subr.mxu0 0.0
    %727 = vmatpush2.msra.mxu0 0.0
    %728 = vmatprep.subr.mxu0 0.0
    %729 = vmatpush2.msra.mxu0 0.0
    %730 = vmatprep.subr.mxu0 0.0
    %731 = vmatpush2.msra.mxu0 0.0
    %732 = vmatprep.subr.mxu0 0.0
    %733 = vmatpush2.msra.mxu0 0.0
    %734 = vmatprep.subr.mxu0 0.0
    %735 = vmatpush2.msra.mxu0 0.0
    %736 = vmatprep.subr.mxu0 0.0
    %737 = vmatpush2.msra.mxu0 0.0
    %738 = vmatprep.subr.mxu0 0.0
    %739 = vmatpush2.msra.mxu0 0.0
    %740 = vmatprep.subr.mxu0 0.0
    %741 = vmatpush2.msra.mxu0 0.0
    %742 = vmatprep.subr.mxu0 0.0
    %743 = vmatpush2.msra.mxu0 0.0
    %744 = vmatprep.subr.mxu0 0.0
    %745 = vmatpush2.msra.mxu0 0.0
    %746 = vmatprep.subr.mxu0 0.0
    %747 = vmatpush2.msra.mxu0 0.0
    %748 = vmatprep.subr.mxu0 0.0
    %749 = vmatpush2.msra.mxu0 0.0
    %750 = vmatprep.subr.mxu0 0.0
    %751 = vmatpush2.msra.mxu0 0.0
    %752 = vmatprep.mubr.f32.mxu0 0.0
    %753 = vmatmul.mubr.f32.gmra.mxu0 %v686
    %v754 = vpop.f32.mrf.mxu0
    %v755 = vadd.f32 %v683, %v754
    %v756 = vpop.f32.mrf.mxu0
    %757 = vdwg.mxu0
    %v758 = vmax.f32 %v755, 0.0
    %v759 = vld [vmem:[%s11] sm:$0xff]
    %v760 = vld [vmem:[%s11 + $0x8] sm:$0xff]
    %v761 = vld [vmem:[%s12] sm:$0x1]
    %v763 = vlaneseq
    %v764 = vshrl.u32 %v763, 7
    %v765 = vsub.s32 0, %v764
    %v766 = vrot.slane %v761, %v765
    %v769 = vsel %vm154, %v758, 0
    %771 = vmatprep.subr.mxu0 0.0
    %772 = vmatpush1.msra.mxu0 0.0
    %773 = vmatprep.subr.mxu0 0.0
    %774 = vmatpush1.msra.mxu0 0.0
    %775 = vmatprep.subr.mxu0 0.0
    %776 = vmatpush1.msra.mxu0 0.0
    %777 = vmatprep.subr.mxu0 0.0
    %778 = vmatpush1.msra.mxu0 0.0
    %779 = vmatprep.subr.mxu0 0.0
    %780 = vmatpush1.msra.mxu0 0.0
    %781 = vmatprep.subr.mxu0 0.0
    %782 = vmatpush1.msra.mxu0 0.0
    %783 = vmatprep.subr.mxu0 0.0
    %784 = vmatpush1.msra.mxu0 0.0
    %785 = vmatprep.subr.mxu0 0.0
    %786 = vmatpush1.msra.mxu0 0.0
    %787 = vmatprep.subr.mxu0 0.0
    %788 = vmatpush1.msra.mxu0 0.0
    %789 = vmatprep.subr.mxu0 0.0
    %790 = vmatpush1.msra.mxu0 0.0
    %791 = vmatprep.subr.mxu0 0.0
    %792 = vmatpush1.msra.mxu0 0.0
    %793 = vmatprep.subr.mxu0 0.0
    %794 = vmatpush1.msra.mxu0 0.0
    %795 = vmatprep.subr.mxu0 0.0
    %796 = vmatpush1.msra.mxu0 0.0
    %797 = vmatprep.subr.mxu0 0.0
    %798 = vmatpush1.msra.mxu0 0.0
    %799 = vmatprep.subr.mxu0 0.0
    %800 = vmatpush1.msra.mxu0 %v760
    %801 = vmatprep.subr.mxu0 0.0
    %802 = vmatpush1.msra.mxu0 %v759
    %803 = vmatprep.subr.mxu0 0.0
    %804 = vmatpush2.msra.mxu0 0.0
    %805 = vmatprep.subr.mxu0 0.0
    %806 = vmatpush2.msra.mxu0 0.0
    %807 = vmatprep.subr.mxu0 0.0
    %808 = vmatpush2.msra.mxu0 0.0
    %809 = vmatprep.subr.mxu0 0.0
    %810 = vmatpush2.msra.mxu0 0.0
    %811 = vmatprep.subr.mxu0 0.0
    %812 = vmatpush2.msra.mxu0 0.0
    %813 = vmatprep.subr.mxu0 0.0
    %814 = vmatpush2.msra.mxu0 0.0
    %815 = vmatprep.subr.mxu0 0.0
    %816 = vmatpush2.msra.mxu0 0.0
    %817 = vmatprep.subr.mxu0 0.0
    %818 = vmatpush2.msra.mxu0 0.0
    %819 = vmatprep.subr.mxu0 0.0
    %820 = vmatpush2.msra.mxu0 0.0
    %821 = vmatprep.subr.mxu0 0.0
    %822 = vmatpush2.msra.mxu0 0.0
    %823 = vmatprep.subr.mxu0 0.0
    %824 = vmatpush2.msra.mxu0 0.0
    %825 = vmatprep.subr.mxu0 0.0
    %826 = vmatpush2.msra.mxu0 0.0
    %827 = vmatprep.subr.mxu0 0.0
    %828 = vmatpush2.msra.mxu0 0.0
    %829 = vmatprep.subr.mxu0 0.0
    %830 = vmatpush2.msra.mxu0 0.0
    %831 = vmatprep.subr.mxu0 0.0
    %832 = vmatpush2.msra.mxu0 0.0
    %833 = vmatprep.subr.mxu0 0.0
    %834 = vmatpush2.msra.mxu0 0.0
    %835 = vmatprep.mubr.f32.mxu0 0.0
    %836 = vmatmul.mubr.f32.gmra.mxu0 %v769
    %v837 = vpop.f32.mrf.mxu0
    %v838 = vadd.f32 %v766, %v837
    %v839 = vpop.f32.mrf.mxu0
    %840 = vdwg.mxu0
    %vm841 = vcmask 27648
    %842 = vst.msk [vmem:[%s15] sm:$0xf] %vm841, %v838
    // Predicated region
    $region54: #{quality_score_head_forward.1} parent=1 // pred_check
      _
    $region55: #{quality_score_head_forward.1} parent=1 // pred_check_branch
      %844 = sbr.rel (0) target = $region57
    $region56: #{quality_score_head_forward.1} parent=1 // pred_region
      _
    $region57: #{quality_score_head_forward.1} parent=1 // pred_fallthru
      _
    // Predicated region
    $region58: #{quality_score_head_forward.1} parent=1 // pred_check
      _
    $region59: #{quality_score_head_forward.1} parent=1 // pred_check_branch
      %846 = sbr.rel (0) target = $region61
    $region60: #{quality_score_head_forward.1} parent=1 // pred_region
      %s848 = ssub.s32 32, 32
      %849 = vsyncadd [#allocation3], %s848
      %s851 = sshll.u32 [#allocation2], 4
      %s852 = int_to_ptr.vmem [resolvable:$true] %s851
      %854 = dma.vmem_to_hbm [thread:$0]  %s852, 32, %s14, [#allocation3]
    $region61: #{quality_score_head_forward.1} parent=1 // pred_fallthru
      _
    // Predicated region
    $region62: #{quality_score_head_forward.1} parent=1 // pred_check
      _
    $region63: #{quality_score_head_forward.1} parent=1 // pred_check_branch
      %856 = sbr.rel (0) target = $region65
    $region64: #{quality_score_head_forward.1} parent=1 // pred_region
      _
    $region65: #{quality_score_head_forward.1} parent=1 // pred_fallthru
      _
    // Predicated region
    $region66: #{quality_score_head_forward.1} parent=1 // pred_check
      _
    $region67: #{quality_score_head_forward.1} parent=1 // pred_check_branch
      %858 = sbr.rel (0) target = $region69
    $region68: #{quality_score_head_forward.1} parent=1 // pred_region
      _
    $region69: #{quality_score_head_forward.1} parent=1 // pred_fallthru
      _
    // Predicated region
    $region70: #{quality_score_head_forward.1} parent=1 // pred_check
      _
    $region71: #{quality_score_head_forward.1} parent=1 // pred_check_branch
      %860 = sbr.rel (0) target = $region73
    $region72: #{quality_score_head_forward.1} parent=1 // pred_region
      %861 = dma.done [#allocation3], 32
    $region73: #{quality_score_head_forward.1} parent=1 // pred_fallthru
      _
    // Predicated region
    $region74: #{quality_score_head_forward.1} parent=1 // pred_check
      _
    $region75: #{quality_score_head_forward.1} parent=1 // pred_check_branch
      %863 = sbr.rel (0) target = $region77
    $region76: #{quality_score_head_forward.1} parent=1 // pred_region
      _
    $region77: #{quality_score_head_forward.1} parent=1 // pred_fallthru
      _
    %864 = vsyncpa [#allocation3], 1

</llo_original>
